<compile_context>
chip_gen: v5e
topology: v5e:2x2
jax: 0.10.0
libtpu: 0.0.40
codegen_flags: <defaults>
</compile_context>

<pallas_src>
import math

import jax
import jax.numpy as jnp
from jax import lax
from jax.experimental import pallas as pl
from jax.experimental.pallas import tpu as pltpu


def _round_up(v, m):
    return ((v + m - 1) // m) * m


def _pick_tile(dim, max_tile, align):
    """Pick (tile, n_tiles, padded_dim) with tile % align == 0 and minimal padding."""
    dim_a = _round_up(dim, align)
    max_tile = max(align, _round_up(max_tile, align))
    n = -(-dim_a // max_tile)                      # cdiv
    tile = _round_up(-(-dim_a // n), align)
    return tile, n, n * tile


def _vmem_capacity_bytes():
    try:
        return int(pltpu.get_tpu_info().vmem_capacity_bytes)
    except Exception:
        return 128 * 1024 * 1024                   # v5e/v6e default


# ---------------------------------------------------------------------------
# Kernels.  y[m, n] = sum_k SiLU(x)[m, k] * w[n, k]  ==  SiLU(x) @ W^T
# (dot_general contracts the last axis of both operands -> no transpose, feeds
# the MXU directly).  SiLU is always computed in f32 on the VPU/EUP.
# ---------------------------------------------------------------------------

def _dense_kernel_w_resident(x_ref, w_ref, b_ref, o_ref):
    # grid = (nN, nM); inner axis is the batch tile -> weight/bias tiles are
    # invariant to the inner axis and stay resident in VMEM.
    x = x_ref[...].astype(jnp.float32)
    s = (x * jax.nn.sigmoid(x)).astype(w_ref.dtype)
    y = lax.dot_general(s, w_ref[...], (((1,), (1,)), ((), ())),
                        preferred_element_type=jnp.float32)
    o_ref[...] = (y + b_ref[...]).astype(o_ref.dtype)


def _dense_kernel_x_resident(x_ref, w_ref, b_ref, o_ref, silu_ref):
    # grid = (nM, nN); inner axis is the output tile -> x tile is resident.
    # SiLU(x) (already in matmul dtype) is cached in scratch at inner index 0
    # and reused for every output tile of the same batch tile.
    @pl.when(pl.program_id(1) == 0)
    def _():
        x = x_ref[...].astype(jnp.float32)
        silu_ref[...] = (x * jax.nn.sigmoid(x)).astype(silu_ref.dtype)

    y = lax.dot_general(silu_ref[...], w_ref[...], (((1,), (1,)), ((), ())),
                        preferred_element_type=jnp.float32)
    o_ref[...] = (y + b_ref[...]).astype(o_ref.dtype)


def _dense_kernel_ktiled(x_ref, w_ref, b_ref, o_ref, acc_ref):
    # grid = (nM, nN, nK), k innermost ("arbitrary").  f32 accumulator in VMEM
    # scratch; bias add folded into the finalize step.
    k = pl.program_id(2)

    @pl.when(k == 0)
    def _():
        acc_ref[...] = jnp.zeros_like(acc_ref)

    x = x_ref[...].astype(jnp.float32)
    s = (x * jax.nn.sigmoid(x)).astype(w_ref.dtype)    # SiLU is elementwise -> per-K-slice is exact
    acc_ref[...] += lax.dot_general(s, w_ref[...], (((1,), (1,)), ((), ())),
                                    preferred_element_type=jnp.float32)

    @pl.when(k == pl.num_programs(2) - 1)
    def _():
        o_ref[...] = (acc_ref[...] + b_ref[...]).astype(o_ref.dtype)


# ---------------------------------------------------------------------------
# Wrapper.
# ---------------------------------------------------------------------------

def prepare_dense_params(weight, bias, *, matmul_dtype=jnp.bfloat16):
    """One-time parameter prep (do this at init, not per call).

    Casting the weight to bf16 here halves weight HBM traffic and VMEM tile
    bytes for every forward call on v5e/v6e/v7x; f32 accumulation is preserved
    inside the kernel via preferred_element_type.  Bias stays f32.
    """
    return weight.astype(matmul_dtype), bias.astype(jnp.float32)


def dense_forward(x, weight, bias, *, output_dim=None, matmul_dtype=None,
                  tm_max=512, tn_max=512, tk_max=None):
    """Pallas forward for Dense: returns (B, output_dim, 1, 1).

    weight may already be bf16 (see prepare_dense_params) -- that dtype is then
    used for the MXU operands with f32 accumulation.  matmul_dtype forces a
    (per-call) wrapper-side cast when the stored weight dtype differs.
    """
    B, K = x.shape
    Nw, Kw = weight.shape
    assert Kw == K, (weight.shape, x.shape)
    N = int(output_dim) if output_dim is not None else Nw

    # MXU operand dtype: derive from the (possibly pre-cast) weight.
    if matmul_dtype is not None and weight.dtype != jnp.dtype(matmul_dtype):
        weight = weight.astype(matmul_dtype)       # outside the kernel, before DMA
    w_dtype = weight.dtype
    w_item = jnp.dtype(w_dtype).itemsize

    # Tile selection: tm 16-aligned for bf16 operands (sublane packing), tn a
    # multiple of 128 lanes (unmasked stores); padding kept minimal.
    sub_align = 16 if w_item < 4 else 8
    tm, nM, B_pad = _pick_tile(B, tm_max, sub_align)
    tn, nN, N_pad = _pick_tile(N, tn_max, 128)

    vmem_cap = _vmem_capacity_bytes()
    vmem_budget = (3 * vmem_cap) // 8              # ~24 MiB on v7x, ~48 MiB on v5e/v6e

    # K tiling: only when the full-K working set would not fit the budget
    # (or when explicitly forced via tk_max).
    ws_full = (2 * (tm * K * 4 + tn * K * w_item + tn * 4 + tm * tn * 4)
               + tm * K * w_item)
    if tk_max is not None:
        tk_cap = tk_max
    else:
        tk_cap = K if ws_full <= vmem_budget else 2048
    if tk_cap < K:
        tk, nK, K_pad = _pick_tile(K, tk_cap, 128)
    else:
        tk, nK, K_pad = K, 1, K

    # Padding (skipped entirely when shapes are already aligned, e.g. when the
    # caller pre-padded the parameters).  Zero padding is inert: SiLU(0)=0 and
    # padded output channels/rows are sliced off below.
    x_p = x
    if B_pad != B or K_pad != K:
        x_p = jnp.pad(x, ((0, B_pad - B), (0, K_pad - K)))
    w_p = weight
    if N_pad != Nw or K_pad != K:
        w_p = jnp.pad(weight, ((0, N_pad - Nw), (0, K_pad - K)))
    b_p = bias.astype(jnp.float32)
    if b_p.shape[0] != N_pad:
        b_p = jnp.pad(b_p, (0, N_pad - b_p.shape[0]))
    b2d = b_p.reshape(1, N_pad)

    # VMEM limit: generous (1.5x the double-buffered working set), clamped to
    # 90% of physical VMEM so v7x's 64 MiB is never over-committed.
    if nK > 1:
        ws = 2 * (tm * tk * 4 + tn * tk * w_item + tn * 4 + tm * tn * 4) + tm * tn * 4
    else:
        ws = (2 * (tm * K_pad * 4 + tn * K_pad * w_item + tn * 4 + tm * tn * 4)
              + tm * K_pad * w_item)
    vmem_limit = int(min(max(ws * 3 // 2, 32 << 20), (vmem_cap * 9) // 10))

    out_shape = jax.ShapeDtypeStruct((B_pad, N_pad), x.dtype)

    if nK > 1:
        # K-tiled path: reduction axis innermost, accumulate in f32 scratch.
        grid_spec = pltpu.PrefetchScalarGridSpec(
            num_scalar_prefetch=0,
            grid=(nM, nN, nK),
            in_specs=[
                pl.BlockSpec((tm, tk), lambda i, j, k: (i, k)),
                pl.BlockSpec((tn, tk), lambda i, j, k: (j, k)),
                pl.BlockSpec((1, tn), lambda i, j, k: (0, j)),
            ],
            out_specs=pl.BlockSpec((tm, tn), lambda i, j, k: (i, j)),
            scratch_shapes=[pltpu.VMEM((tm, tn), jnp.float32)],
        )
        kernel = _dense_kernel_ktiled
        cparams = pltpu.CompilerParams(
            dimension_semantics=("parallel", "parallel", "arbitrary"),
            vmem_limit_bytes=vmem_limit)
    elif B_pad * 4 > N_pad * w_item:
        # x is the larger operand -> make it resident across the inner (output
        # tile) axis and cache SiLU(x) in VMEM scratch.  Inner axis is
        # "arbitrary" so megacore splitting cannot cross the scratch dependency.
        grid_spec = pltpu.PrefetchScalarGridSpec(
            num_scalar_prefetch=0,
            grid=(nM, nN),
            in_specs=[
                pl.BlockSpec((tm, K_pad), lambda i, j: (i, 0)),
                pl.BlockSpec((tn, K_pad), lambda i, j: (j, 0)),
                pl.BlockSpec((1, tn), lambda i, j: (0, j)),
            ],
            out_specs=pl.BlockSpec((tm, tn), lambda i, j: (i, j)),
            scratch_shapes=[pltpu.VMEM((tm, K_pad), w_dtype)],
        )
        kernel = _dense_kernel_x_resident
        cparams = pltpu.CompilerParams(
            dimension_semantics=("parallel", "arbitrary"),
            vmem_limit_bytes=vmem_limit)
    else:
        # weight is the larger operand -> batch tile is the inner axis, so the
        # weight/bias tiles are invariant to the inner axis and stay resident.
        grid_spec = pltpu.PrefetchScalarGridSpec(
            num_scalar_prefetch=0,
            grid=(nN, nM),
            in_specs=[
                pl.BlockSpec((tm, K_pad), lambda j, i: (i, 0)),
                pl.BlockSpec((tn, K_pad), lambda j, i: (j, 0)),
                pl.BlockSpec((1, tn), lambda j, i: (0, j)),
            ],
            out_specs=pl.BlockSpec((tm, tn), lambda j, i: (i, j)),
        )
        kernel = _dense_kernel_w_resident
        cparams = pltpu.CompilerParams(
            dimension_semantics=("parallel", "parallel"),
            vmem_limit_bytes=vmem_limit)

    out2d = pl.pallas_call(
        kernel, out_shape=out_shape, grid_spec=grid_spec,
        compiler_params=cparams,
    )(x_p, w_p, b2d)

    if B_pad != B or N_pad != N:
        out2d = out2d[:B, :N]
    # Reshape to feature-map form ([..., None, None]).
    return out2d[..., None, None]


def init_dense_params(key, input_dim, output_dim, dtype=jnp.float32):
    """Deterministic init mirroring nn.Linear defaults (uniform +/- 1/sqrt(fan_in))."""
    kw, kb = jax.random.split(key)
    bound = 1.0 / math.sqrt(input_dim)
    weight = jax.random.uniform(
        kw, (output_dim, input_dim), dtype=dtype, minval=-bound, maxval=bound)
    bias = jax.random.uniform(
        kb, (output_dim,), dtype=dtype, minval=-bound, maxval=bound)
    return weight, bias


if __name__ == "__main__":
    key = jax.random.PRNGKey(0)
    k_x1, k_p1, k_x3, k_p3, k_x4, k_p4 = jax.random.split(key, 6)

    # --- Case 1: module-scale shapes (time-embedding Dense), f32 weights. ---
    B, input_dim, output_dim = 8, 32, 64
    x = jax.random.normal(k_x1, (B, input_dim), dtype=jnp.float32)
    weight, bias = init_dense_params(k_p1, input_dim, output_dim)
    ref = (jax.nn.silu(x) @ weight.T + bias)[..., None, None]

    out = jax.block_until_ready(dense_forward(x, weight, bias))
    assert out.shape == (B, output_dim, 1, 1), out.shape
    assert jnp.allclose(out, ref, atol=1e-2, rtol=1e-2), "f32 mismatch vs reference"

    # --- Case 2: same shapes, pre-cast bf16 weights (halved weight HBM traffic). ---
    w_bf16, b_f32 = prepare_dense_params(weight, bias, matmul_dtype=jnp.bfloat16)
    out_bf16 = jax.block_until_ready(dense_forward(x, w_bf16, b_f32))
    assert out_bf16.shape == (B, output_dim, 1, 1), out_bf16.shape
    assert jnp.allclose(out_bf16, ref, atol=3e-2, rtol=3e-2), "bf16 mismatch vs reference"

    # --- Case 3: x-resident path with SiLU cached in VMEM scratch. ---
    B3, K3, N3 = 512, 256, 256
    x3 = jax.random.normal(k_x3, (B3, K3), dtype=jnp.float32)
    w3, b3 = init_dense_params(k_p3, K3, N3)
    ref3 = (jax.nn.silu(x3) @ w3.T + b3)[..., None, None]
    out3 = jax.block_until_ready(dense_forward(x3, w3, b3, tm_max=256, tn_max=128))
    assert out3.shape == (B3, N3, 1, 1), out3.shape
    assert jnp.allclose(out3, ref3, atol=2e-2, rtol=2e-2), "x-resident mismatch vs reference"

    # --- Case 4: K-tiled path with f32 accumulator, bias folded into finalize. ---
    B4, K4, N4 = 64, 512, 256
    x4 = jax.random.normal(k_x4, (B4, K4), dtype=jnp.float32)
    w4, b4 = init_dense_params(k_p4, K4, N4)
    ref4 = (jax.nn.silu(x4) @ w4.T + b4)[..., None, None]
    out4 = jax.block_until_ready(
        dense_forward(x4, w4, b4, tm_max=64, tn_max=128, tk_max=256))
    assert out4.shape == (B4, N4, 1, 1), out4.shape
    assert jnp.allclose(out4, ref4, atol=2e-2, rtol=2e-2), "K-tiled mismatch vs reference"

    print("KERNEL_OK")
</pallas_src>

<mosaic_0001>
module attributes {stable_mosaic.version = 11 : i64} {
  func.func @_dense_kernel_w_resident(%arg0: i32, %arg1: i32, %arg2: memref<8x32xf32, #tpu.memory_space<vmem>>, %arg3: memref<128x32xf32, #tpu.memory_space<vmem>>, %arg4: memref<1x128xf32, #tpu.memory_space<vmem>>, %arg5: memref<8x128xf32, #tpu.memory_space<vmem>>) attributes {dimension_semantics = [#tpu.dimension_semantics<parallel>, #tpu.dimension_semantics<parallel>], iteration_bounds = array<i64: 1, 1>, scalar_prefetch = 0 : i64, scratch_operands = 0 : i64, tpu.core_type = #tpu.core_type<tc>, window_params = [{transform_indices = @transform_0, window_bounds = array<i64: 8, 32>}, {transform_indices = @transform_1, window_bounds = array<i64: 128, 32>}, {transform_indices = @transform_2, window_bounds = array<i64: 1, 128>}, {transform_indices = @transform_3, window_bounds = array<i64: 8, 128>}]} {
    %c0 = arith.constant 0 : index
    %c0_0 = arith.constant 0 : index
    %0 = vector.load %arg2[%c0, %c0_0] : memref<8x32xf32, #tpu.memory_space<vmem>>, vector<8x32xf32>
    %1 = arith.negf %0 : vector<8x32xf32>
    %2 = math.exp %1 : vector<8x32xf32>
    %cst = arith.constant 1.000000e+00 : f32
    %3 = vector.broadcast %cst : f32 to vector<8x32xf32>
    %4 = arith.addf %3, %2 : vector<8x32xf32>
    %5 = arith.divf %3, %4 : vector<8x32xf32>
    %6 = arith.mulf %0, %5 : vector<8x32xf32>
    %c0_1 = arith.constant 0 : index
    %c0_2 = arith.constant 0 : index
    %7 = vector.load %arg3[%c0_1, %c0_2] : memref<128x32xf32, #tpu.memory_space<vmem>>, vector<128x32xf32>
    %cst_3 = arith.constant dense<0.000000e+00> : vector<8x128xf32>
    %8 = tpu.matmul %6, %7, %cst_3 {dimension_numbers = #tpu.dot_dimension_numbers<[1], [1], [0], [0], [0, 0, 1, 0], [], []>} : vector<8x32xf32>, vector<128x32xf32>, vector<8x128xf32> -> vector<8x128xf32>
    %c0_4 = arith.constant 0 : index
    %c0_5 = arith.constant 0 : index
    %9 = vector.load %arg4[%c0_4, %c0_5] : memref<1x128xf32, #tpu.memory_space<vmem>>, vector<1x128xf32>
    %10 = vector.broadcast %9 : vector<1x128xf32> to vector<8x128xf32>
    %11 = arith.addf %8, %10 : vector<8x128xf32>
    %c0_6 = arith.constant 0 : index
    %c0_7 = arith.constant 0 : index
    %12 = vector.load %arg5[%c0_6, %c0_7] : memref<8x128xf32, #tpu.memory_space<vmem>>, vector<8x128xf32>
    tpu.vector_store %arg5[%c0_6, %c0_7], %11 {strides = array<i32>} : memref<8x128xf32, #tpu.memory_space<vmem>>, vector<8x128xf32>,
    return
  }
  func.func @transform_0(%arg0: i32, %arg1: i32) -> (i32, i32) {
    %c0_i32 = arith.constant 0 : i32
    %c0_i32_0 = arith.constant 0 : i32
    return %arg1, %c0_i32 : i32, i32
  }
  func.func @transform_1(%arg0: i32, %arg1: i32) -> (i32, i32) {
    %c0_i32 = arith.constant 0 : i32
    %c0_i32_0 = arith.constant 0 : i32
    return %arg0, %c0_i32 : i32, i32
  }
  func.func @transform_2(%arg0: i32, %arg1: i32) -> (i32, i32) {
    %c0_i32 = arith.constant 0 : i32
    %c0_i32_0 = arith.constant 0 : i32
    return %c0_i32, %arg0 : i32, i32
  }
  func.func @transform_3(%arg0: i32, %arg1: i32) -> (i32, i32) {
    %c0_i32 = arith.constant 0 : i32
    return %arg1, %arg0 : i32, i32
  }
}

</mosaic_0001>

<llo_original>
// kernel: tpu_custom_call.1
$region0: #{tpu_custom_call.1}
  #allocation0 [shape = 'u32[]', space=smem, size = 0x4, offset = 0x4, fixed_abs, tag = 'smem constant byte address 0x4 - core index']
  #allocation1 [shape = 'u32[72,128]{1,0:T(1,128)}', space=vmem, size = 0x9000, scoped, tag = 'internal scratch']
  %s0 = inlined_call_operand.vmem [shape: f32[8,32], index: 0, kind: input, shape index: {}]
  %s1 = inlined_call_operand.vmem [shape: f32[128,32], index: 1, kind: input, shape index: {}]
  %s2 = inlined_call_operand.vmem [shape: f32[1,128], index: 2, kind: input, shape index: {}]
  %s3 = inlined_call_operand.hbm [shape: f32[8,128], index: 3, kind: output, shape index: {}]
  %s4 = sld [smem:[#allocation0]]
  $region22: #{tpu_custom_call.1} parent=0
    _
  %s6 = ssub.s32 1, %s4
  %s7 = scalar_select 0, %s6, %s4
  $region1: #{tpu_custom_call.1} parent=0
    #allocation2 [shape = 'u8[4096]{0}', space=vmem, size = 0x1000, scoped, tag = 'output window, operand 0, single buffered']
    #allocation3 [shape = 's32[1]{0}', space=sflag, size = 0x4, scoped, tag = 'scoped memory for tpu_custom_call.1']
    %8 = vsyncpa [#allocation3], 0
    // Predicated region
    $region2: #{tpu_custom_call.1} parent=1 // pred_check
      _
    $region3: #{tpu_custom_call.1} parent=1 // pred_check_branch
      %10 = sbr.rel (0) target = $region5
    $region4: #{tpu_custom_call.1} parent=1 // pred_region
      _
    $region5: #{tpu_custom_call.1} parent=1 // pred_fallthru
      _
    // Predicated region
    $region6: #{tpu_custom_call.1} parent=1 // pred_check
      _
    $region7: #{tpu_custom_call.1} parent=1 // pred_check_branch
      %12 = sbr.rel (0) target = $region9
    $region8: #{tpu_custom_call.1} parent=1 // pred_region
      _
    $region9: #{tpu_custom_call.1} parent=1 // pred_fallthru
      _
    // Predicated region
    $region10: #{tpu_custom_call.1} parent=1 // pred_check
      _
    $region11: #{tpu_custom_call.1} parent=1 // pred_check_branch
      %14 = sbr.rel (0) target = $region13
    $region12: #{tpu_custom_call.1} parent=1 // pred_region
      _
    $region13: #{tpu_custom_call.1} parent=1 // pred_fallthru
      _
    %v15 = vld [vmem:[%s0] sm:$0xff]
    %v16 = vxor.u32 %v15, 2147483648
    %v17 = vmul.f32 %v16, 1.442695
    %v18 = vpow.pop %v17
    %v19 = vadd.f32 %v18, 1.0
    %v20 = vrcp.pop %v19
    %v21 = vmul.f32 %v19, %v20
    %v22 = vsub.f32 1.0, %v21
    %v23 = vmul.f32 %v20, %v22
    %v24 = vadd.f32 %v20, %v23
    %vm25 = vweird.f32 %v19
    %vm26 = vweird.f32 %v20
    %vm27 = vmor %vm25, %vm26
    %v28 = vsel %vm27, %v20, %v24
    %v29 = vand.u32 2147483647, %v19
    %vm30 = vcmp.eq.f32.partialorder %v29, 8.507059e+37
    %v31 = vand.u32 %v19, 2147483648
    %v32 = vor.u32 1.1754944e-38, %v31
    %v33 = vsel %vm30, %v32, %v28
    %v34 = vmul.f32 1.0, %v33
    %v35 = vmul.f32 %v15, %v34
    %v36 = vld [vmem:[%s1] sm:$0xff]
    %v37 = vld [vmem:[%s1 + $0x8] sm:$0xff]
    %v38 = vld [vmem:[%s1 + $0x10] sm:$0xff]
    %v39 = vld [vmem:[%s1 + $0x18] sm:$0xff]
    %v40 = vld [vmem:[%s1 + $0x20] sm:$0xff]
    %v41 = vld [vmem:[%s1 + $0x28] sm:$0xff]
    %v42 = vld [vmem:[%s1 + $0x30] sm:$0xff]
    %v43 = vld [vmem:[%s1 + $0x38] sm:$0xff]
    %v44 = vld [vmem:[%s1 + $0x40] sm:$0xff]
    %v45 = vld [vmem:[%s1 + $0x48] sm:$0xff]
    %v46 = vld [vmem:[%s1 + $0x50] sm:$0xff]
    %v47 = vld [vmem:[%s1 + $0x58] sm:$0xff]
    %v48 = vld [vmem:[%s1 + $0x60] sm:$0xff]
    %v49 = vld [vmem:[%s1 + $0x68] sm:$0xff]
    %v50 = vld [vmem:[%s1 + $0x70] sm:$0xff]
    %v51 = vld [vmem:[%s1 + $0x78] sm:$0xff]
    %v52 = vld [vmem:[%s2] sm:$0x1]
    %v54 = vperm.slane %v52, 0
    %vm56 = vcmask 261120
    %v58 = vsel %vm56, %v35, 0
    %v61 = vsel %vm56, %v36, 0
    %v64 = vsel %vm56, %v37, 0
    %v67 = vsel %vm56, %v38, 0
    %v70 = vsel %vm56, %v39, 0
    %v73 = vsel %vm56, %v40, 0
    %v76 = vsel %vm56, %v41, 0
    %v79 = vsel %vm56, %v42, 0
    %v82 = vsel %vm56, %v43, 0
    %v85 = vsel %vm56, %v44, 0
    %v88 = vsel %vm56, %v45, 0
    %v91 = vsel %vm56, %v46, 0
    %v94 = vsel %vm56, %v47, 0
    %v97 = vsel %vm56, %v48, 0
    %v100 = vsel %vm56, %v49, 0
    %v103 = vsel %vm56, %v50, 0
    %v106 = vsel %vm56, %v51, 0
    %108 = vmatpush.xpose.msra.mxu0 %v106
    %109 = vmatpush.xpose.msra.mxu0 %v103
    %110 = vmatpush.xpose.msra.mxu0 %v100
    %111 = vmatpush.xpose.msra.mxu0 %v97
    %112 = vmatpush.xpose.msra.mxu0 %v94
    %113 = vmatpush.xpose.msra.mxu0 %v91
    %114 = vmatpush.xpose.msra.mxu0 %v88
    %115 = vmatpush.xpose.msra.mxu0 %v85
    %116 = vmatpush.xpose.msra.mxu0 %v82
    %117 = vmatpush.xpose.msra.mxu0 %v79
    %118 = vmatpush.xpose.msra.mxu0 %v76
    %119 = vmatpush.xpose.msra.mxu0 %v73
    %120 = vmatpush.xpose.msra.mxu0 %v70
    %121 = vmatpush.xpose.msra.mxu0 %v67
    %122 = vmatpush.xpose.msra.mxu0 %v64
    %123 = vmatpush.xpose.msra.mxu0 %v61
    %124 = vmatmul.f32.gmra.mxu0 %v58
    %v125 = vpop.f32.mrf.mxu0
    %v126 = vadd.f32 %v54, %v125
    %127 = vdwg.mxu0
    %128 = vst [vmem:[#allocation2] sm:$0xff] %v126
    // Predicated region
    $region14: #{tpu_custom_call.1} parent=1 // pred_check
      _
    $region15: #{tpu_custom_call.1} parent=1 // pred_check_branch
      %130 = sbr.rel (0) target = $region17
    $region16: #{tpu_custom_call.1} parent=1 // pred_region
      %132 = vsyncadd [#allocation3], 0
      %s134 = sshll.u32 [#allocation2], 4
      %s135 = int_to_ptr.vmem [resolvable:$true] %s134
      %s136 = sshll.u32 %s3, 4
      %s137 = int_to_ptr.hbm [resolvable:$true] %s136
      %139 = dma.vmem_to_hbm [thread:$0]  %s135, 128, %s137, [#allocation3]
    $region17: #{tpu_custom_call.1} parent=1 // pred_fallthru
      _
    // Predicated region
    $region18: #{tpu_custom_call.1} parent=1 // pred_check
      _
    $region19: #{tpu_custom_call.1} parent=1 // pred_check_branch
      %141 = sbr.rel (0) target = $region21
    $region20: #{tpu_custom_call.1} parent=1 // pred_region
      %143 = dma.done [#allocation3], 128
    $region21: #{tpu_custom_call.1} parent=1 // pred_fallthru
      _
    %144 = vsyncpa [#allocation3], 1

</llo_original>
